<compile_context>
chip_gen: v7x
topology: tpu7x:2x2x1
jax: 0.10.0
libtpu: 0.0.40
codegen_flags: <defaults>
</compile_context>

<pallas_src>
import functools

import jax
import jax.numpy as jnp
from jax import lax
from jax.experimental import pallas as pl
from jax.experimental.pallas import tpu as pltpu


def _pow_fixed(x, p):
    """x**p for non-negative x, with the exponent specialized at trace time.

    p is a baked-in Python float, so integer / half-integer exponents lower to
    pure VPU multiplies (+ one sqrt) instead of the exp(p*log(x)) pair of EUP
    transcendentals that lax.pow with a float exponent emits.
    """
    p = float(p)
    if p == 1.0:
        return x
    if p == 0.5:
        return jnp.sqrt(x)
    if p.is_integer() and 1.0 < p <= 8.0:
        out = x
        for _ in range(int(p) - 1):
            out = out * x
        return out
    if (2.0 * p).is_integer() and p > 1.0:
        # p = k + 0.5  ->  x**k * sqrt(x)   (e.g. beta = 2.5)
        out = jnp.sqrt(x)
        for _ in range(int(p - 0.5)):
            out = out * x
        return out
    return x ** p  # fallback: generic pow (EUP exp/log)


def _make_prediction_kernel(x_ref, yt_ref, centers_ref, attn_ref, mask_ref,
                            assoc_ref, ypred_ref, softwta_ref, support_ref,
                            *, r, q, specificity, beta,
                            temp_competition, temp_softwta, phi):
    """Fused make_prediction + ClusterSupport for one trial item (one grid step).

    Clusters live on the LANE axis throughout; the feature axis D sits on
    sublanes so the per-cluster distance reduction lands directly in a (1, C)
    lane-major row with no relayout.

    Block shapes (all f32):
      x_ref      : (1, D, 1)  current trial item (column)
      yt_ref     : (1, 2, 1)  one-hot true label (column)
      centers_ref: (D, C)     cluster centers, transposed (Distance.weight.T)
      attn_ref   : (D, 1)     dimension-wise attention (column)
      mask_ref   : (1, C)     MaskNonRecruit (1.0 for recruited clusters)
      assoc_ref  : (2, C)     ClsLayer.weight (association weights)
    Outputs (one block of the (N, ...) arrays per grid step):
      ypred_ref  : (1, 1, 2)  classification logits
      softwta_ref: (1, 1, C)  clusters_actv_softwta
      support_ref: (1, 1, 1)  total support (for the recruitment threshold)
    """
    x = x_ref[0]                  # (D, 1)
    yt = yt_ref[0]                # (2, 1)
    centers = centers_ref[...]    # (D, C)
    attn = attn_ref[...]          # (D, 1)
    mask = mask_ref[...]          # (1, C)
    assoc = assoc_ref[...]        # (2, C)

    # --- layers.Distance: per-dimension distance |x - h_j|^r ----------------
    d = x - centers                                            # (D, C)
    if float(r).is_integer() and int(r) % 2 == 0:
        dim_dist = _pow_fixed(d, r)          # even power: abs() unnecessary
    else:
        dim_dist = _pow_fixed(jnp.abs(d), r)

    # --- layers.DimWiseAttention: dimension-wise attention weighting --------
    attn_dim_dist = dim_dist * attn                            # (D, C)

    # --- layers.ClusterActivation: H_j = exp(-c * (sum_d)^(q/r)) ------------
    s = jnp.sum(attn_dim_dist, axis=0, keepdims=True)          # (1, C)
    H = jnp.exp(-specificity * _pow_fixed(s, q / r))           # (1, C)

    # --- layers.Mask (MaskNonRecruit): zero out non-recruited clusters ------
    clusters_actv = H * mask                                   # (1, C)
    nz = clusters_actv > 0.0

    # --- layers.ClusterSoftmax (ClusterCompetition, temp, beta) -------------
    # beta-power normalization over recruited clusters:
    #   w_j = a_j^beta / sum_k a_k^beta ;  out_j = w_j * a_j
    # TODO(synk): layers.py unavailable; temp_competition assumed to cancel in
    # the beta-power ratio.
    safe = jnp.where(nz, clusters_actv, 1.0)
    pw = jnp.where(nz, _pow_fixed(safe, beta), 0.0)
    comp_w = pw / jnp.maximum(jnp.sum(pw, axis=1, keepdims=True), 1e-30)
    competed = comp_w * clusters_actv                          # (1, C)

    # --- layers.ClusterSoftmax (SoftWTA, temp, beta=None) -------------------
    logits = competed * (1.0 / temp_softwta)
    mval = jnp.max(jnp.where(nz, logits, -1e30), axis=1, keepdims=True)
    mval = jnp.maximum(mval, 0.0)      # stays finite when nothing is recruited
    e = jnp.where(nz, jnp.exp(logits - mval), 0.0)
    wta_w = e / jnp.maximum(jnp.sum(e, axis=1, keepdims=True), 1e-30)
    softwta = wta_w * competed                                 # (1, C)

    # --- layers.Classfication: y = Phi * softwta @ assoc^T  (VPU, no MXU) ---
    y0 = jnp.sum(softwta * assoc[0:1, :], axis=1, keepdims=True)   # (1, 1)
    y1 = jnp.sum(softwta * assoc[1:2, :], axis=1, keepdims=True)   # (1, 1)
    lane = lax.broadcasted_iota(jnp.int32, (1, 2), 1)
    y = phi * jnp.where(lane == 0, y0, y1)                     # (1, 2)

    # --- layers.ClusterSupport (fused -> no 2nd launch / host readback) -----
    # TODO(synk): ClusterSupport internals unavailable; standard SUSTAIN
    # support (association to the true class / total |association|) used.
    denom = jnp.sum(jnp.abs(assoc), axis=0, keepdims=True)     # (1, C)
    assoc_true = jnp.sum(yt * assoc, axis=0, keepdims=True)    # (1, C)
    sup_per = jnp.where(denom > 0.0,
                        assoc_true / jnp.maximum(denom, 1e-30), 0.0)
    num = jnp.sum(jnp.where(nz, sup_per * softwta, 0.0), axis=1, keepdims=True)
    total = num / jnp.maximum(jnp.sum(softwta, axis=1, keepdims=True), 1e-30)

    ypred_ref[0] = y.astype(ypred_ref.dtype)
    softwta_ref[0] = softwta.astype(softwta_ref.dtype)
    support_ref[0] = total.astype(support_ref.dtype)


class ClusteringModelPallas:
    """JAX/Pallas re-implementation of ClusteringModel's forward pass."""

    def __init__(self, config, key):
        self.C = int(config['max_num_clusters'])
        self.D = int(config['in_features'])
        self.r = float(config['r'])
        self.q = float(config['q'])
        self.specificity = float(config['specificity'])
        self.beta = float(config['beta'])
        self.temp_competition = float(config['temp_competition'])
        self.temp_softwta = float(config['temp_softwta'])
        self.Phi = float(config['Phi'])
        self.thr = float(config['thr'])

        # Deterministic parameter init (transposed, lane-major layout).
        k_assoc, _ = jax.random.split(key)
        self.centers_t = jnp.zeros((self.D, self.C), jnp.float32)      # Distance.weight.T
        self.attn_col = jnp.full((self.D, 1), 1.0 / self.D, jnp.float32)
        self.mask_row = jnp.zeros((1, self.C), jnp.float32)            # MaskNonRecruit
        self.assoc_t = 0.05 * jax.random.normal(k_assoc, (2, self.C), jnp.float32)

        # TODO(synk): torch.optim.SGD / BCEWithLogitsLoss are training-only and
        # not part of the forward pass; omitted.

        self._call_cache = {}      # n -> raw pallas_call
        self._batch_cache = {}     # n -> jitted batched predict wrapper
        self._trial_step = self._build_trial_step()

    # ---------------- pallas_call construction ----------------------------
    def _build_predict_call(self, n):
        if n in self._call_cache:
            return self._call_cache[n]
        D, C = self.D, self.C
        kernel = functools.partial(
            _make_prediction_kernel,
            r=self.r, q=self.q, specificity=self.specificity, beta=self.beta,
            temp_competition=self.temp_competition,
            temp_softwta=self.temp_softwta, phi=self.Phi)
        call = pl.pallas_call(
            kernel,
            grid=(n,),                                            # trial items
            in_specs=[
                pl.BlockSpec((1, D, 1), lambda i: (i, 0, 0)),     # x (per trial)
                pl.BlockSpec((1, 2, 1), lambda i: (i, 0, 0)),     # one-hot y_true
                pl.BlockSpec((D, C), lambda i: (0, 0)),           # centers (resident)
                pl.BlockSpec((D, 1), lambda i: (0, 0)),           # attention
                pl.BlockSpec((1, C), lambda i: (0, 0)),           # recruit mask
                pl.BlockSpec((2, C), lambda i: (0, 0)),           # association weights
            ],
            out_specs=(
                pl.BlockSpec((1, 1, 2), lambda i: (i, 0, 0)),     # y_pred
                pl.BlockSpec((1, 1, C), lambda i: (i, 0, 0)),     # softwta (lane-dense)
                pl.BlockSpec((1, 1, 1), lambda i: (i, 0, 0)),     # total support
            ),
            out_shape=(
                jax.ShapeDtypeStruct((n, 1, 2), jnp.float32),
                jax.ShapeDtypeStruct((n, 1, C), jnp.float32),
                jax.ShapeDtypeStruct((n, 1, 1), jnp.float32),
            ),
            compiler_params=pltpu.CompilerParams(
                dimension_semantics=("parallel",)),   # both v7x TCs when n > 1
        )
        self._call_cache[n] = call
        return call

    def _build_trial_step(self):
        predict = self._build_predict_call(1)
        D, C, thr = self.D, self.C, self.thr

        def run_predict(x3, yt3, centers_t, attn_col, mask_row, assoc_t):
            yp, sw, sup = predict(x3, yt3, centers_t, attn_col, mask_row, assoc_t)
            return yp.reshape(1, 2), sw.reshape(1, C), sup.reshape(())

        def step(centers_t, mask_row, attn_col, assoc_t,
                 x_col, y_true, signature, is_first):
            x3 = x_col.reshape(1, D, 1)
            yt3 = jax.nn.one_hot(y_true, 2, dtype=jnp.float32).reshape(1, 2, 1)

            def recruit(c, m):
                c = lax.dynamic_update_slice(c, x_col, (0, signature))
                m = lax.dynamic_update_slice(
                    m, jnp.ones((1, 1), jnp.float32), (0, signature))
                return c, m

            def first_trial(_):
                # trial 0: recruit, then a single prediction launch.
                c, m = recruit(centers_t, mask_row)
                yp, _, _ = run_predict(x3, yt3, c, attn_col, m, assoc_t)
                return c, m, yp

            def later_trial(_):
                # One fused launch gives y_pred, softwta AND total support;
                # the threshold decision stays on device (no float() readback).
                yp1, _, sup1 = run_predict(x3, yt3, centers_t, attn_col,
                                           mask_row, assoc_t)

                def recruit_and_repredict(_):
                    c, m = recruit(centers_t, mask_row)
                    yp2, _, _ = run_predict(x3, yt3, c, attn_col, m, assoc_t)
                    return c, m, yp2

                def reuse_prediction(_):
                    # Parameters unchanged -> the original's second
                    # make_prediction would return exactly yp1; reuse it.
                    return centers_t, mask_row, yp1

                return lax.cond(sup1 < thr, recruit_and_repredict,
                                reuse_prediction, None)

            return lax.cond(is_first, first_trial, later_trial, None)

        return jax.jit(step)

    def _get_batch_predict(self, n):
        if n in self._batch_cache:
            return self._batch_cache[n]
        call = self._build_predict_call(n)
        D, C = self.D, self.C

        def fn(x, centers_t, attn_col, mask_row, assoc_t):
            x3 = x.reshape(n, D, 1)
            yt3 = jnp.zeros((n, 2, 1), jnp.float32)   # label unused here
            yp, sw, sup = call(x3, yt3, centers_t, attn_col, mask_row, assoc_t)
            return yp.reshape(n, 2), sw.reshape(n, C), sup.reshape(n)

        jfn = jax.jit(fn)
        self._batch_cache[n] = jfn
        return jfn

    # ---------------- module methods ---------------------------------------
    def recruit_cluster(self, center, signature):
        """Distance.weight[signature, :] = center ; mask[:, signature] = 1."""
        center = jnp.asarray(center, jnp.float32).reshape(self.D)
        sig = int(signature)
        self.centers_t = self.centers_t.at[:, sig].set(center)
        self.mask_row = self.mask_row.at[0, sig].set(1.0)

    def make_prediction(self, inp):
        """Predict for one item or a batch of items (grid over trial items)."""
        x = jnp.asarray(inp, jnp.float32)
        if x.ndim == 1:
            x = x.reshape(1, -1)
        n = x.shape[0]
        y_pred, softwta, _ = self._get_batch_predict(n)(
            x, self.centers_t, self.attn_col, self.mask_row, self.assoc_t)
        nonzero_clusters_indices = jnp.nonzero(
            softwta[-1] > 0.0, size=self.C, fill_value=-1)
        return y_pred, nonzero_clusters_indices, softwta

    def evaluate_support(self, nonzero_clusters_indices, clusters_actv_softwta,
                         y_true):
        """Host-side mirror of the PyTorch support loop.

        Not used by forward() (support is computed inside the fused kernel);
        kept for API parity with the original module.
        """
        sw = jnp.asarray(clusters_actv_softwta, jnp.float32).reshape(-1, self.C)[-1]
        assoc = self.assoc_t                                       # (2, C)
        denom = jnp.sum(jnp.abs(assoc), axis=0)                    # (C,)
        sup = jnp.where(denom > 0.0,
                        assoc[int(y_true)] / jnp.maximum(denom, 1e-30), 0.0)
        idx = jnp.asarray(nonzero_clusters_indices[-1])
        valid = idx >= 0
        safe_idx = jnp.clip(idx, 0, self.C - 1)
        total = jnp.sum(jnp.where(valid, sup[safe_idx] * sw[safe_idx], 0.0))
        return total / jnp.maximum(jnp.sum(sw), 1e-30)

    def forward(self, inp, epoch, i, signature, y_true):
        x_col = jnp.asarray(inp, jnp.float32).reshape(self.D, 1)
        is_first = jnp.asarray(bool(epoch == 0 and i == 0))
        self.centers_t, self.mask_row, y_pred = self._trial_step(
            self.centers_t, self.mask_row, self.attn_col, self.assoc_t,
            x_col, jnp.asarray(y_true, jnp.int32),
            jnp.asarray(signature, jnp.int32), is_first)
        return y_pred


if __name__ == "__main__":
    config = dict(
        max_num_clusters=8, in_features=8, out_features=8,
        r=2.0, q=1.0, specificity=1.0,
        high_attn_constraint='sumtoone', beta=2.5,
        temp_competition=1.0, temp_softwta=0.1,
        Phi=1.5, thr=0.3,
        lr_clustering=0.1, center_lr_multiplier=1.0,
        high_attn_lr_multiplier=1.0, asso_lr_multiplier=1.0,
        optim='sgd', loss_fn='bcelogits')

    key = jax.random.PRNGKey(0)
    k_model, k_x = jax.random.split(key)

    model = ClusteringModelPallas(config, k_model)
    xs = jax.random.uniform(k_x, (4, config['in_features']), jnp.float32)

    # Sequential trials: each forward() is one jitted device step with 1-2
    # fused kernel launches and no host<->device synchronization.
    y1 = model.forward(xs[0], epoch=0, i=0, signature=0, y_true=0)
    y2 = model.forward(xs[1], epoch=0, i=1, signature=1, y_true=1)
    y3 = model.forward(xs[2], epoch=0, i=2, signature=2, y_true=0)

    # Batched prediction path: one pallas_call with a parallel grid over items.
    yb, nz_idx, swb = model.make_prediction(xs)
    sup = model.evaluate_support(nz_idx, swb, y_true=1)

    jax.block_until_ready((y1, y2, y3, yb, swb, sup))
    assert y1.shape == (1, 2) and y2.shape == (1, 2) and y3.shape == (1, 2)
    assert yb.shape == (4, 2)
    assert swb.shape == (4, config['max_num_clusters'])
    finite = all(bool(jnp.all(jnp.isfinite(a))) for a in (y1, y2, y3, yb, swb))
    assert finite and bool(jnp.isfinite(sup))
    print("KERNEL_OK")
</pallas_src>

<mosaic_0001>
module attributes {stable_mosaic.version = 11 : i64} {
  func.func @_make_prediction_kernel(%arg0: i32, %arg1: memref<1x8x1xf32, #tpu.memory_space<vmem>>, %arg2: memref<1x2x1xf32, #tpu.memory_space<vmem>>, %arg3: memref<8x8xf32, #tpu.memory_space<vmem>>, %arg4: memref<8x1xf32, #tpu.memory_space<vmem>>, %arg5: memref<1x8xf32, #tpu.memory_space<vmem>>, %arg6: memref<2x8xf32, #tpu.memory_space<vmem>>, %arg7: memref<1x1x2xf32, #tpu.memory_space<vmem>>, %arg8: memref<1x1x8xf32, #tpu.memory_space<vmem>>, %arg9: memref<1x1x1xf32, #tpu.memory_space<vmem>>) attributes {dimension_semantics = [#tpu.dimension_semantics<parallel>], iteration_bounds = array<i64: 1>, scalar_prefetch = 0 : i64, scratch_operands = 0 : i64, tpu.core_type = #tpu.core_type<tc>, window_params = [{transform_indices = @transform_0, window_bounds = array<i64: 1, 8, 1>}, {transform_indices = @transform_1, window_bounds = array<i64: 1, 2, 1>}, {pipeline_mode = #tpu.pipeline_mode<synchronous>, transform_indices = @transform_2, window_bounds = array<i64: 8, 8>}, {pipeline_mode = #tpu.pipeline_mode<synchronous>, transform_indices = @transform_3, window_bounds = array<i64: 8, 1>}, {pipeline_mode = #tpu.pipeline_mode<synchronous>, transform_indices = @transform_4, window_bounds = array<i64: 1, 8>}, {pipeline_mode = #tpu.pipeline_mode<synchronous>, transform_indices = @transform_5, window_bounds = array<i64: 2, 8>}, {transform_indices = @transform_6, window_bounds = array<i64: 1, 1, 2>}, {transform_indices = @transform_7, window_bounds = array<i64: 1, 1, 8>}, {transform_indices = @transform_8, window_bounds = array<i64: 1, 1, 1>}]} {
    %c0 = arith.constant 0 : index
    %c0_0 = arith.constant 0 : index
    %c0_1 = arith.constant 0 : index
    %0 = vector.load %arg1[%c0, %c0_0, %c0_1] : memref<1x8x1xf32, #tpu.memory_space<vmem>>, vector<1x8x1xf32>
    %1 = vector.shape_cast %0 : vector<1x8x1xf32> to vector<8x1xf32>
    %c0_2 = arith.constant 0 : index
    %c0_3 = arith.constant 0 : index
    %c0_4 = arith.constant 0 : index
    %2 = vector.load %arg2[%c0_2, %c0_3, %c0_4] : memref<1x2x1xf32, #tpu.memory_space<vmem>>, vector<1x2x1xf32>
    %3 = vector.shape_cast %2 : vector<1x2x1xf32> to vector<2x1xf32>
    %c0_5 = arith.constant 0 : index
    %c0_6 = arith.constant 0 : index
    %4 = vector.load %arg3[%c0_5, %c0_6] : memref<8x8xf32, #tpu.memory_space<vmem>>, vector<8x8xf32>
    %c0_7 = arith.constant 0 : index
    %c0_8 = arith.constant 0 : index
    %5 = vector.load %arg4[%c0_7, %c0_8] : memref<8x1xf32, #tpu.memory_space<vmem>>, vector<8x1xf32>
    %c0_9 = arith.constant 0 : index
    %c0_10 = arith.constant 0 : index
    %6 = vector.load %arg5[%c0_9, %c0_10] : memref<1x8xf32, #tpu.memory_space<vmem>>, vector<1x8xf32>
    %c0_11 = arith.constant 0 : index
    %c0_12 = arith.constant 0 : index
    %7 = vector.load %arg6[%c0_11, %c0_12] : memref<2x8xf32, #tpu.memory_space<vmem>>, vector<2x8xf32>
    %8 = vector.broadcast %1 : vector<8x1xf32> to vector<8x8xf32>
    %9 = arith.subf %8, %4 : vector<8x8xf32>
    %10 = arith.mulf %9, %9 : vector<8x8xf32>
    %11 = vector.broadcast %5 : vector<8x1xf32> to vector<8x8xf32>
    %12 = arith.mulf %10, %11 : vector<8x8xf32>
    %cst = arith.constant dense<0.000000e+00> : vector<8xf32>
    %13 = vector.multi_reduction <add>, %12, %cst [0] : vector<8x8xf32> to vector<8xf32>
    %14 = vector.shape_cast %13 : vector<8xf32> to vector<1x8xf32>
    %15 = math.sqrt %14 : vector<1x8xf32>
    %cst_13 = arith.constant -1.000000e+00 : f32
    %16 = vector.broadcast %cst_13 : f32 to vector<1x8xf32>
    %17 = arith.mulf %16, %15 : vector<1x8xf32>
    %18 = math.exp %17 : vector<1x8xf32>
    %19 = arith.mulf %18, %6 : vector<1x8xf32>
    %cst_14 = arith.constant 0.000000e+00 : f32
    %20 = vector.broadcast %cst_14 : f32 to vector<1x8xf32>
    %21 = arith.cmpf ogt, %19, %20 : vector<1x8xf32>
    %cst_15 = arith.constant 1.000000e+00 : f32
    %22 = vector.broadcast %cst_15 : f32 to vector<1x8xf32>
    %23 = arith.select %21, %19, %22 : vector<1x8xi1>, vector<1x8xf32>
    %24 = math.sqrt %23 : vector<1x8xf32>
    %25 = arith.mulf %24, %23 : vector<1x8xf32>
    %26 = arith.mulf %25, %23 : vector<1x8xf32>
    %cst_16 = arith.constant 0.000000e+00 : f32
    %27 = vector.broadcast %cst_16 : f32 to vector<1x8xf32>
    %28 = arith.select %21, %26, %27 : vector<1x8xi1>, vector<1x8xf32>
    %cst_17 = arith.constant dense<0.000000e+00> : vector<1xf32>
    %29 = vector.multi_reduction <add>, %28, %cst_17 [1] : vector<1x8xf32> to vector<1xf32>
    %30 = vector.shape_cast %29 : vector<1xf32> to vector<1x1xf32>
    %cst_18 = arith.constant 1.000000e-30 : f32
    %31 = vector.broadcast %cst_18 : f32 to vector<1x1xf32>
    %32 = arith.maximumf %30, %31 : vector<1x1xf32>
    %33 = vector.broadcast %32 : vector<1x1xf32> to vector<1x8xf32>
    %34 = arith.divf %28, %33 : vector<1x8xf32>
    %35 = arith.mulf %34, %19 : vector<1x8xf32>
    %cst_19 = arith.constant 1.000000e+01 : f32
    %36 = vector.broadcast %cst_19 : f32 to vector<1x8xf32>
    %37 = arith.mulf %35, %36 : vector<1x8xf32>
    %cst_20 = arith.constant -1.000000e+30 : f32
    %38 = vector.broadcast %cst_20 : f32 to vector<1x8xf32>
    %39 = arith.select %21, %37, %38 : vector<1x8xi1>, vector<1x8xf32>
    %cst_21 = arith.constant dense<0xFF800000> : vector<1xf32>
    %40 = vector.multi_reduction <maximumf>, %39, %cst_21 [1] : vector<1x8xf32> to vector<1xf32>
    %41 = vector.shape_cast %40 : vector<1xf32> to vector<1x1xf32>
    %cst_22 = arith.constant 0.000000e+00 : f32
    %42 = vector.broadcast %cst_22 : f32 to vector<1x1xf32>
    %43 = arith.maximumf %41, %42 : vector<1x1xf32>
    %44 = vector.broadcast %43 : vector<1x1xf32> to vector<1x8xf32>
    %45 = arith.subf %37, %44 : vector<1x8xf32>
    %46 = math.exp %45 : vector<1x8xf32>
    %cst_23 = arith.constant 0.000000e+00 : f32
    %47 = vector.broadcast %cst_23 : f32 to vector<1x8xf32>
    %48 = arith.select %21, %46, %47 : vector<1x8xi1>, vector<1x8xf32>
    %cst_24 = arith.constant dense<0.000000e+00> : vector<1xf32>
    %49 = vector.multi_reduction <add>, %48, %cst_24 [1] : vector<1x8xf32> to vector<1xf32>
    %50 = vector.shape_cast %49 : vector<1xf32> to vector<1x1xf32>
    %cst_25 = arith.constant 1.000000e-30 : f32
    %51 = vector.broadcast %cst_25 : f32 to vector<1x1xf32>
    %52 = arith.maximumf %50, %51 : vector<1x1xf32>
    %53 = vector.broadcast %52 : vector<1x1xf32> to vector<1x8xf32>
    %54 = arith.divf %48, %53 : vector<1x8xf32>
    %55 = arith.mulf %54, %35 : vector<1x8xf32>
    %56 = vector.extract_strided_slice %7 {offsets = [0, 0], sizes = [1, 8], strides = [1, 1]} : vector<2x8xf32> to vector<1x8xf32>
    %57 = arith.mulf %55, %56 : vector<1x8xf32>
    %cst_26 = arith.constant dense<0.000000e+00> : vector<1xf32>
    %58 = vector.multi_reduction <add>, %57, %cst_26 [1] : vector<1x8xf32> to vector<1xf32>
    %59 = vector.shape_cast %58 : vector<1xf32> to vector<1x1xf32>
    %60 = vector.extract_strided_slice %7 {offsets = [1, 0], sizes = [1, 8], strides = [1, 1]} : vector<2x8xf32> to vector<1x8xf32>
    %61 = arith.mulf %55, %60 : vector<1x8xf32>
    %cst_27 = arith.constant dense<0.000000e+00> : vector<1xf32>
    %62 = vector.multi_reduction <add>, %61, %cst_27 [1] : vector<1x8xf32> to vector<1xf32>
    %63 = vector.shape_cast %62 : vector<1xf32> to vector<1x1xf32>
    %64 = tpu.iota {dimensions = array<i32: 1>} : vector<1x2xi32>
    %c0_i32 = arith.constant 0 : i32
    %65 = vector.broadcast %c0_i32 : i32 to vector<1x2xi32>
    %66 = arith.cmpi eq, %64, %65 : vector<1x2xi32>
    %67 = vector.shape_cast %59 : vector<1x1xf32> to vector<1x1xf32>
    %68 = vector.broadcast %67 : vector<1x1xf32> to vector<1x2xf32>
    %69 = vector.shape_cast %63 : vector<1x1xf32> to vector<1x1xf32>
    %70 = vector.broadcast %69 : vector<1x1xf32> to vector<1x2xf32>
    %71 = arith.select %66, %68, %70 : vector<1x2xi1>, vector<1x2xf32>
    %cst_28 = arith.constant 1.500000e+00 : f32
    %72 = vector.broadcast %cst_28 : f32 to vector<1x2xf32>
    %73 = arith.mulf %72, %71 : vector<1x2xf32>
    %74 = math.absf %7 : vector<2x8xf32>
    %cst_29 = arith.constant dense<0.000000e+00> : vector<8xf32>
    %75 = vector.multi_reduction <add>, %74, %cst_29 [0] : vector<2x8xf32> to vector<8xf32>
    %76 = vector.shape_cast %75 : vector<8xf32> to vector<1x8xf32>
    %77 = vector.broadcast %3 : vector<2x1xf32> to vector<2x8xf32>
    %78 = arith.mulf %77, %7 : vector<2x8xf32>
    %cst_30 = arith.constant dense<0.000000e+00> : vector<8xf32>
    %79 = vector.multi_reduction <add>, %78, %cst_30 [0] : vector<2x8xf32> to vector<8xf32>
    %80 = vector.shape_cast %79 : vector<8xf32> to vector<1x8xf32>
    %cst_31 = arith.constant 0.000000e+00 : f32
    %81 = vector.broadcast %cst_31 : f32 to vector<1x8xf32>
    %82 = arith.cmpf ogt, %76, %81 : vector<1x8xf32>
    %cst_32 = arith.constant 1.000000e-30 : f32
    %83 = vector.broadcast %cst_32 : f32 to vector<1x8xf32>
    %84 = arith.maximumf %76, %83 : vector<1x8xf32>
    %85 = arith.divf %80, %84 : vector<1x8xf32>
    %cst_33 = arith.constant 0.000000e+00 : f32
    %86 = vector.broadcast %cst_33 : f32 to vector<1x8xf32>
    %87 = arith.select %82, %85, %86 : vector<1x8xi1>, vector<1x8xf32>
    %88 = arith.mulf %87, %55 : vector<1x8xf32>
    %cst_34 = arith.constant 0.000000e+00 : f32
    %89 = vector.broadcast %cst_34 : f32 to vector<1x8xf32>
    %90 = arith.select %21, %88, %89 : vector<1x8xi1>, vector<1x8xf32>
    %cst_35 = arith.constant dense<0.000000e+00> : vector<1xf32>
    %91 = vector.multi_reduction <add>, %90, %cst_35 [1] : vector<1x8xf32> to vector<1xf32>
    %92 = vector.shape_cast %91 : vector<1xf32> to vector<1x1xf32>
    %cst_36 = arith.constant dense<0.000000e+00> : vector<1xf32>
    %93 = vector.multi_reduction <add>, %55, %cst_36 [1] : vector<1x8xf32> to vector<1xf32>
    %94 = vector.shape_cast %93 : vector<1xf32> to vector<1x1xf32>
    %cst_37 = arith.constant 1.000000e-30 : f32
    %95 = vector.broadcast %cst_37 : f32 to vector<1x1xf32>
    %96 = arith.maximumf %94, %95 : vector<1x1xf32>
    %97 = arith.divf %92, %96 : vector<1x1xf32>
    %c0_38 = arith.constant 0 : index
    %c0_39 = arith.constant 0 : index
    %c0_40 = arith.constant 0 : index
    %98 = vector.load %arg7[%c0_38, %c0_39, %c0_40] : memref<1x1x2xf32, #tpu.memory_space<vmem>>, vector<1x1x2xf32>
    %99 = vector.shape_cast %98 : vector<1x1x2xf32> to vector<1x2xf32>
    %100 = vector.shape_cast %73 : vector<1x2xf32> to vector<1x1x2xf32>
    tpu.vector_store %arg7[%c0_38, %c0_39, %c0_40], %100 {strides = array<i32>} : memref<1x1x2xf32, #tpu.memory_space<vmem>>, vector<1x1x2xf32>,
    %c0_41 = arith.constant 0 : index
    %c0_42 = arith.constant 0 : index
    %c0_43 = arith.constant 0 : index
    %101 = vector.load %arg8[%c0_41, %c0_42, %c0_43] : memref<1x1x8xf32, #tpu.memory_space<vmem>>, vector<1x1x8xf32>
    %102 = vector.shape_cast %101 : vector<1x1x8xf32> to vector<1x8xf32>
    %103 = vector.shape_cast %55 : vector<1x8xf32> to vector<1x1x8xf32>
    tpu.vector_store %arg8[%c0_41, %c0_42, %c0_43], %103 {strides = array<i32>} : memref<1x1x8xf32, #tpu.memory_space<vmem>>, vector<1x1x8xf32>,
    %c0_44 = arith.constant 0 : index
    %c0_45 = arith.constant 0 : index
    %c0_46 = arith.constant 0 : index
    %104 = vector.load %arg9[%c0_44, %c0_45, %c0_46] : memref<1x1x1xf32, #tpu.memory_space<vmem>>, vector<1x1x1xf32>
    %105 = vector.shape_cast %104 : vector<1x1x1xf32> to vector<1x1xf32>
    %106 = vector.shape_cast %97 : vector<1x1xf32> to vector<1x1x1xf32>
    tpu.vector_store %arg9[%c0_44, %c0_45, %c0_46], %106 {strides = array<i32>} : memref<1x1x1xf32, #tpu.memory_space<vmem>>, vector<1x1x1xf32>,
    return
  }
  func.func @transform_0(%arg0: i32) -> (i32, i32, i32) {
    %c0_i32 = arith.constant 0 : i32
    %c0_i32_0 = arith.constant 0 : i32
    %c0_i32_1 = arith.constant 0 : i32
    return %arg0, %c0_i32, %c0_i32_0 : i32, i32, i32
  }
  func.func @transform_1(%arg0: i32) -> (i32, i32, i32) {
    %c0_i32 = arith.constant 0 : i32
    %c0_i32_0 = arith.constant 0 : i32
    %c0_i32_1 = arith.constant 0 : i32
    return %arg0, %c0_i32, %c0_i32_0 : i32, i32, i32
  }
  func.func @transform_2(%arg0: i32) -> (i32, i32) {
    %c0_i32 = arith.constant 0 : i32
    %c0_i32_0 = arith.constant 0 : i32
    %c0_i32_1 = arith.constant 0 : i32
    return %c0_i32, %c0_i32_0 : i32, i32
  }
  func.func @transform_3(%arg0: i32) -> (i32, i32) {
    %c0_i32 = arith.constant 0 : i32
    %c0_i32_0 = arith.constant 0 : i32
    %c0_i32_1 = arith.constant 0 : i32
    return %c0_i32, %c0_i32_0 : i32, i32
  }
  func.func @transform_4(%arg0: i32) -> (i32, i32) {
    %c0_i32 = arith.constant 0 : i32
    %c0_i32_0 = arith.constant 0 : i32
    %c0_i32_1 = arith.constant 0 : i32
    return %c0_i32, %c0_i32_0 : i32, i32
  }
  func.func @transform_5(%arg0: i32) -> (i32, i32) {
    %c0_i32 = arith.constant 0 : i32
    %c0_i32_0 = arith.constant 0 : i32
    %c0_i32_1 = arith.constant 0 : i32
    return %c0_i32, %c0_i32_0 : i32, i32
  }
  func.func @transform_6(%arg0: i32) -> (i32, i32, i32) {
    %c0_i32 = arith.constant 0 : i32
    %c0_i32_0 = arith.constant 0 : i32
    %c0_i32_1 = arith.constant 0 : i32
    return %arg0, %c0_i32, %c0_i32_0 : i32, i32, i32
  }
  func.func @transform_7(%arg0: i32) -> (i32, i32, i32) {
    %c0_i32 = arith.constant 0 : i32
    %c0_i32_0 = arith.constant 0 : i32
    %c0_i32_1 = arith.constant 0 : i32
    return %arg0, %c0_i32, %c0_i32_0 : i32, i32, i32
  }
  func.func @transform_8(%arg0: i32) -> (i32, i32, i32) {
    %c0_i32 = arith.constant 0 : i32
    %c0_i32_0 = arith.constant 0 : i32
    %c0_i32_1 = arith.constant 0 : i32
    return %arg0, %c0_i32, %c0_i32_0 : i32, i32, i32
  }
}

module attributes {stable_mosaic.version = 11 : i64} {
  func.func @_make_prediction_kernel(%arg0: i32, %arg1: memref<1x8x1xf32, #tpu.memory_space<vmem>>, %arg2: memref<1x2x1xf32, #tpu.memory_space<vmem>>, %arg3: memref<8x8xf32, #tpu.memory_space<vmem>>, %arg4: memref<8x1xf32, #tpu.memory_space<vmem>>, %arg5: memref<1x8xf32, #tpu.memory_space<vmem>>, %arg6: memref<2x8xf32, #tpu.memory_space<vmem>>, %arg7: memref<1x1x2xf32, #tpu.memory_space<vmem>>, %arg8: memref<1x1x8xf32, #tpu.memory_space<vmem>>, %arg9: memref<1x1x1xf32, #tpu.memory_space<vmem>>) attributes {dimension_semantics = [#tpu.dimension_semantics<parallel>], iteration_bounds = array<i64: 1>, scalar_prefetch = 0 : i64, scratch_operands = 0 : i64, tpu.core_type = #tpu.core_type<tc>, window_params = [{transform_indices = @transform_0, window_bounds = array<i64: 1, 8, 1>}, {transform_indices = @transform_1, window_bounds = array<i64: 1, 2, 1>}, {pipeline_mode = #tpu.pipeline_mode<synchronous>, transform_indices = @transform_2, window_bounds = array<i64: 8, 8>}, {pipeline_mode = #tpu.pipeline_mode<synchronous>, transform_indices = @transform_3, window_bounds = array<i64: 8, 1>}, {pipeline_mode = #tpu.pipeline_mode<synchronous>, transform_indices = @transform_4, window_bounds = array<i64: 1, 8>}, {pipeline_mode = #tpu.pipeline_mode<synchronous>, transform_indices = @transform_5, window_bounds = array<i64: 2, 8>}, {transform_indices = @transform_6, window_bounds = array<i64: 1, 1, 2>}, {transform_indices = @transform_7, window_bounds = array<i64: 1, 1, 8>}, {transform_indices = @transform_8, window_bounds = array<i64: 1, 1, 1>}]} {
    %c0 = arith.constant 0 : index
    %c0_0 = arith.constant 0 : index
    %c0_1 = arith.constant 0 : index
    %0 = vector.load %arg1[%c0, %c0_0, %c0_1] : memref<1x8x1xf32, #tpu.memory_space<vmem>>, vector<1x8x1xf32>
    %1 = vector.shape_cast %0 : vector<1x8x1xf32> to vector<8x1xf32>
    %c0_2 = arith.constant 0 : index
    %c0_3 = arith.constant 0 : index
    %c0_4 = arith.constant 0 : index
    %2 = vector.load %arg2[%c0_2, %c0_3, %c0_4] : memref<1x2x1xf32, #tpu.memory_space<vmem>>, vector<1x2x1xf32>
    %3 = vector.shape_cast %2 : vector<1x2x1xf32> to vector<2x1xf32>
    %c0_5 = arith.constant 0 : index
    %c0_6 = arith.constant 0 : index
    %4 = vector.load %arg3[%c0_5, %c0_6] : memref<8x8xf32, #tpu.memory_space<vmem>>, vector<8x8xf32>
    %c0_7 = arith.constant 0 : index
    %c0_8 = arith.constant 0 : index
    %5 = vector.load %arg4[%c0_7, %c0_8] : memref<8x1xf32, #tpu.memory_space<vmem>>, vector<8x1xf32>
    %c0_9 = arith.constant 0 : index
    %c0_10 = arith.constant 0 : index
    %6 = vector.load %arg5[%c0_9, %c0_10] : memref<1x8xf32, #tpu.memory_space<vmem>>, vector<1x8xf32>
    %c0_11 = arith.constant 0 : index
    %c0_12 = arith.constant 0 : index
    %7 = vector.load %arg6[%c0_11, %c0_12] : memref<2x8xf32, #tpu.memory_space<vmem>>, vector<2x8xf32>
    %8 = vector.broadcast %1 : vector<8x1xf32> to vector<8x8xf32>
    %9 = arith.subf %8, %4 : vector<8x8xf32>
    %10 = arith.mulf %9, %9 : vector<8x8xf32>
    %11 = vector.broadcast %5 : vector<8x1xf32> to vector<8x8xf32>
    %12 = arith.mulf %10, %11 : vector<8x8xf32>
    %cst = arith.constant dense<0.000000e+00> : vector<8xf32>
    %13 = vector.multi_reduction <add>, %12, %cst [0] : vector<8x8xf32> to vector<8xf32>
    %14 = vector.shape_cast %13 : vector<8xf32> to vector<1x8xf32>
    %15 = math.sqrt %14 : vector<1x8xf32>
    %cst_13 = arith.constant -1.000000e+00 : f32
    %16 = vector.broadcast %cst_13 : f32 to vector<1x8xf32>
    %17 = arith.mulf %16, %15 : vector<1x8xf32>
    %18 = math.exp %17 : vector<1x8xf32>
    %19 = arith.mulf %18, %6 : vector<1x8xf32>
    %cst_14 = arith.constant 0.000000e+00 : f32
    %20 = vector.broadcast %cst_14 : f32 to vector<1x8xf32>
    %21 = arith.cmpf ogt, %19, %20 : vector<1x8xf32>
    %cst_15 = arith.constant 1.000000e+00 : f32
    %22 = vector.broadcast %cst_15 : f32 to vector<1x8xf32>
    %23 = arith.select %21, %19, %22 : vector<1x8xi1>, vector<1x8xf32>
    %24 = math.sqrt %23 : vector<1x8xf32>
    %25 = arith.mulf %24, %23 : vector<1x8xf32>
    %26 = arith.mulf %25, %23 : vector<1x8xf32>
    %cst_16 = arith.constant 0.000000e+00 : f32
    %27 = vector.broadcast %cst_16 : f32 to vector<1x8xf32>
    %28 = arith.select %21, %26, %27 : vector<1x8xi1>, vector<1x8xf32>
    %cst_17 = arith.constant dense<0.000000e+00> : vector<1xf32>
    %29 = vector.multi_reduction <add>, %28, %cst_17 [1] : vector<1x8xf32> to vector<1xf32>
    %30 = vector.shape_cast %29 : vector<1xf32> to vector<1x1xf32>
    %cst_18 = arith.constant 1.000000e-30 : f32
    %31 = vector.broadcast %cst_18 : f32 to vector<1x1xf32>
    %32 = arith.maximumf %30, %31 : vector<1x1xf32>
    %33 = vector.broadcast %32 : vector<1x1xf32> to vector<1x8xf32>
    %34 = arith.divf %28, %33 : vector<1x8xf32>
    %35 = arith.mulf %34, %19 : vector<1x8xf32>
    %cst_19 = arith.constant 1.000000e+01 : f32
    %36 = vector.broadcast %cst_19 : f32 to vector<1x8xf32>
    %37 = arith.mulf %35, %36 : vector<1x8xf32>
    %cst_20 = arith.constant -1.000000e+30 : f32
    %38 = vector.broadcast %cst_20 : f32 to vector<1x8xf32>
    %39 = arith.select %21, %37, %38 : vector<1x8xi1>, vector<1x8xf32>
    %cst_21 = arith.constant dense<0xFF800000> : vector<1xf32>
    %40 = vector.multi_reduction <maximumf>, %39, %cst_21 [1] : vector<1x8xf32> to vector<1xf32>
    %41 = vector.shape_cast %40 : vector<1xf32> to vector<1x1xf32>
    %cst_22 = arith.constant 0.000000e+00 : f32
    %42 = vector.broadcast %cst_22 : f32 to vector<1x1xf32>
    %43 = arith.maximumf %41, %42 : vector<1x1xf32>
    %44 = vector.broadcast %43 : vector<1x1xf32> to vector<1x8xf32>
    %45 = arith.subf %37, %44 : vector<1x8xf32>
    %46 = math.exp %45 : vector<1x8xf32>
    %cst_23 = arith.constant 0.000000e+00 : f32
    %47 = vector.broadcast %cst_23 : f32 to vector<1x8xf32>
    %48 = arith.select %21, %46, %47 : vector<1x8xi1>, vector<1x8xf32>
    %cst_24 = arith.constant dense<0.000000e+00> : vector<1xf32>
    %49 = vector.multi_reduction <add>, %48, %cst_24 [1] : vector<1x8xf32> to vector<1xf32>
    %50 = vector.shape_cast %49 : vector<1xf32> to vector<1x1xf32>
    %cst_25 = arith.constant 1.000000e-30 : f32
    %51 = vector.broadcast %cst_25 : f32 to vector<1x1xf32>
    %52 = arith.maximumf %50, %51 : vector<1x1xf32>
    %53 = vector.broadcast %52 : vector<1x1xf32> to vector<1x8xf32>
    %54 = arith.divf %48, %53 : vector<1x8xf32>
    %55 = arith.mulf %54, %35 : vector<1x8xf32>
    %56 = vector.extract_strided_slice %7 {offsets = [0, 0], sizes = [1, 8], strides = [1, 1]} : vector<2x8xf32> to vector<1x8xf32>
    %57 = arith.mulf %55, %56 : vector<1x8xf32>
    %cst_26 = arith.constant dense<0.000000e+00> : vector<1xf32>
    %58 = vector.multi_reduction <add>, %57, %cst_26 [1] : vector<1x8xf32> to vector<1xf32>
    %59 = vector.shape_cast %58 : vector<1xf32> to vector<1x1xf32>
    %60 = vector.extract_strided_slice %7 {offsets = [1, 0], sizes = [1, 8], strides = [1, 1]} : vector<2x8xf32> to vector<1x8xf32>
    %61 = arith.mulf %55, %60 : vector<1x8xf32>
    %cst_27 = arith.constant dense<0.000000e+00> : vector<1xf32>
    %62 = vector.multi_reduction <add>, %61, %cst_27 [1] : vector<1x8xf32> to vector<1xf32>
    %63 = vector.shape_cast %62 : vector<1xf32> to vector<1x1xf32>
    %64 = tpu.iota {dimensions = array<i32: 1>} : vector<1x2xi32>
    %c0_i32 = arith.constant 0 : i32
    %65 = vector.broadcast %c0_i32 : i32 to vector<1x2xi32>
    %66 = arith.cmpi eq, %64, %65 : vector<1x2xi32>
    %67 = vector.shape_cast %59 : vector<1x1xf32> to vector<1x1xf32>
    %68 = vector.broadcast %67 : vector<1x1xf32> to vector<1x2xf32>
    %69 = vector.shape_cast %63 : vector<1x1xf32> to vector<1x1xf32>
    %70 = vector.broadcast %69 : vector<1x1xf32> to vector<1x2xf32>
    %71 = arith.select %66, %68, %70 : vector<1x2xi1>, vector<1x2xf32>
    %cst_28 = arith.constant 1.500000e+00 : f32
    %72 = vector.broadcast %cst_28 : f32 to vector<1x2xf32>
    %73 = arith.mulf %72, %71 : vector<1x2xf32>
    %74 = math.absf %7 : vector<2x8xf32>
    %cst_29 = arith.constant dense<0.000000e+00> : vector<8xf32>
    %75 = vector.multi_reduction <add>, %74, %cst_29 [0] : vector<2x8xf32> to vector<8xf32>
    %76 = vector.shape_cast %75 : vector<8xf32> to vector<1x8xf32>
    %77 = vector.broadcast %3 : vector<2x1xf32> to vector<2x8xf32>
    %78 = arith.mulf %77, %7 : vector<2x8xf32>
    %cst_30 = arith.constant dense<0.000000e+00> : vector<8xf32>
    %79 = vector.multi_reduction <add>, %78, %cst_30 [0] : vector<2x8xf32> to vector<8xf32>
    %80 = vector.shape_cast %79 : vector<8xf32> to vector<1x8xf32>
    %cst_31 = arith.constant 0.000000e+00 : f32
    %81 = vector.broadcast %cst_31 : f32 to vector<1x8xf32>
    %82 = arith.cmpf ogt, %76, %81 : vector<1x8xf32>
    %cst_32 = arith.constant 1.000000e-30 : f32
    %83 = vector.broadcast %cst_32 : f32 to vector<1x8xf32>
    %84 = arith.maximumf %76, %83 : vector<1x8xf32>
    %85 = arith.divf %80, %84 : vector<1x8xf32>
    %cst_33 = arith.constant 0.000000e+00 : f32
    %86 = vector.broadcast %cst_33 : f32 to vector<1x8xf32>
    %87 = arith.select %82, %85, %86 : vector<1x8xi1>, vector<1x8xf32>
    %88 = arith.mulf %87, %55 : vector<1x8xf32>
    %cst_34 = arith.constant 0.000000e+00 : f32
    %89 = vector.broadcast %cst_34 : f32 to vector<1x8xf32>
    %90 = arith.select %21, %88, %89 : vector<1x8xi1>, vector<1x8xf32>
    %cst_35 = arith.constant dense<0.000000e+00> : vector<1xf32>
    %91 = vector.multi_reduction <add>, %90, %cst_35 [1] : vector<1x8xf32> to vector<1xf32>
    %92 = vector.shape_cast %91 : vector<1xf32> to vector<1x1xf32>
    %cst_36 = arith.constant dense<0.000000e+00> : vector<1xf32>
    %93 = vector.multi_reduction <add>, %55, %cst_36 [1] : vector<1x8xf32> to vector<1xf32>
    %94 = vector.shape_cast %93 : vector<1xf32> to vector<1x1xf32>
    %cst_37 = arith.constant 1.000000e-30 : f32
    %95 = vector.broadcast %cst_37 : f32 to vector<1x1xf32>
    %96 = arith.maximumf %94, %95 : vector<1x1xf32>
    %97 = arith.divf %92, %96 : vector<1x1xf32>
    %c0_38 = arith.constant 0 : index
    %c0_39 = arith.constant 0 : index
    %c0_40 = arith.constant 0 : index
    %98 = vector.load %arg7[%c0_38, %c0_39, %c0_40] : memref<1x1x2xf32, #tpu.memory_space<vmem>>, vector<1x1x2xf32>
    %99 = vector.shape_cast %98 : vector<1x1x2xf32> to vector<1x2xf32>
    %100 = vector.shape_cast %73 : vector<1x2xf32> to vector<1x1x2xf32>
    tpu.vector_store %arg7[%c0_38, %c0_39, %c0_40], %100 {strides = array<i32>} : memref<1x1x2xf32, #tpu.memory_space<vmem>>, vector<1x1x2xf32>,
    %c0_41 = arith.constant 0 : index
    %c0_42 = arith.constant 0 : index
    %c0_43 = arith.constant 0 : index
    %101 = vector.load %arg8[%c0_41, %c0_42, %c0_43] : memref<1x1x8xf32, #tpu.memory_space<vmem>>, vector<1x1x8xf32>
    %102 = vector.shape_cast %101 : vector<1x1x8xf32> to vector<1x8xf32>
    %103 = vector.shape_cast %55 : vector<1x8xf32> to vector<1x1x8xf32>
    tpu.vector_store %arg8[%c0_41, %c0_42, %c0_43], %103 {strides = array<i32>} : memref<1x1x8xf32, #tpu.memory_space<vmem>>, vector<1x1x8xf32>,
    %c0_44 = arith.constant 0 : index
    %c0_45 = arith.constant 0 : index
    %c0_46 = arith.constant 0 : index
    %104 = vector.load %arg9[%c0_44, %c0_45, %c0_46] : memref<1x1x1xf32, #tpu.memory_space<vmem>>, vector<1x1x1xf32>
    %105 = vector.shape_cast %104 : vector<1x1x1xf32> to vector<1x1xf32>
    %106 = vector.shape_cast %97 : vector<1x1xf32> to vector<1x1x1xf32>
    tpu.vector_store %arg9[%c0_44, %c0_45, %c0_46], %106 {strides = array<i32>} : memref<1x1x1xf32, #tpu.memory_space<vmem>>, vector<1x1x1xf32>,
    return
  }
  func.func @transform_0(%arg0: i32) -> (i32, i32, i32) {
    %c0_i32 = arith.constant 0 : i32
    %c0_i32_0 = arith.constant 0 : i32
    %c0_i32_1 = arith.constant 0 : i32
    return %arg0, %c0_i32, %c0_i32_0 : i32, i32, i32
  }
  func.func @transform_1(%arg0: i32) -> (i32, i32, i32) {
    %c0_i32 = arith.constant 0 : i32
    %c0_i32_0 = arith.constant 0 : i32
    %c0_i32_1 = arith.constant 0 : i32
    return %arg0, %c0_i32, %c0_i32_0 : i32, i32, i32
  }
  func.func @transform_2(%arg0: i32) -> (i32, i32) {
    %c0_i32 = arith.constant 0 : i32
    %c0_i32_0 = arith.constant 0 : i32
    %c0_i32_1 = arith.constant 0 : i32
    return %c0_i32, %c0_i32_0 : i32, i32
  }
  func.func @transform_3(%arg0: i32) -> (i32, i32) {
    %c0_i32 = arith.constant 0 : i32
    %c0_i32_0 = arith.constant 0 : i32
    %c0_i32_1 = arith.constant 0 : i32
    return %c0_i32, %c0_i32_0 : i32, i32
  }
  func.func @transform_4(%arg0: i32) -> (i32, i32) {
    %c0_i32 = arith.constant 0 : i32
    %c0_i32_0 = arith.constant 0 : i32
    %c0_i32_1 = arith.constant 0 : i32
    return %c0_i32, %c0_i32_0 : i32, i32
  }
  func.func @transform_5(%arg0: i32) -> (i32, i32) {
    %c0_i32 = arith.constant 0 : i32
    %c0_i32_0 = arith.constant 0 : i32
    %c0_i32_1 = arith.constant 0 : i32
    return %c0_i32, %c0_i32_0 : i32, i32
  }
  func.func @transform_6(%arg0: i32) -> (i32, i32, i32) {
    %c0_i32 = arith.constant 0 : i32
    %c0_i32_0 = arith.constant 0 : i32
    %c0_i32_1 = arith.constant 0 : i32
    return %arg0, %c0_i32, %c0_i32_0 : i32, i32, i32
  }
  func.func @transform_7(%arg0: i32) -> (i32, i32, i32) {
    %c0_i32 = arith.constant 0 : i32
    %c0_i32_0 = arith.constant 0 : i32
    %c0_i32_1 = arith.constant 0 : i32
    return %arg0, %c0_i32, %c0_i32_0 : i32, i32, i32
  }
  func.func @transform_8(%arg0: i32) -> (i32, i32, i32) {
    %c0_i32 = arith.constant 0 : i32
    %c0_i32_0 = arith.constant 0 : i32
    %c0_i32_1 = arith.constant 0 : i32
    return %arg0, %c0_i32, %c0_i32_0 : i32, i32, i32
  }
}

</mosaic_0001>

<llo_original>
// kernel: branch_0_fun.1
$region0: #{branch_0_fun.1}
  #allocation0 [shape = 'u32[]', space=smem, size = 0x4, offset = 0x4, fixed_abs, tag = 'smem constant byte address 0x4 - core index']
  #allocation1 [shape = 'u32[144,128]{1,0:T(1,128)}', space=vmem, size = 0x12000, scoped, tag = 'internal scratch']
  %s0 = inlined_call_operand.vmem [shape: f32[1,8,1], index: 0, kind: input, shape index: {}]
  %s1 = inlined_call_operand.vmem [shape: f32[1,2,1], index: 1, kind: input, shape index: {}]
  %s2 = inlined_call_operand.vmem [shape: f32[8,8], index: 2, kind: input, shape index: {}]
  %s3 = inlined_call_operand.vmem [shape: f32[8,1], index: 3, kind: input, shape index: {}]
  %s4 = inlined_call_operand.vmem [shape: f32[1,8], index: 4, kind: input, shape index: {}]
  %s5 = inlined_call_operand.vmem [shape: f32[2,8], index: 5, kind: input, shape index: {}]
  %s6 = inlined_call_operand.vmem [shape: f32[1,1,2], index: 6, kind: output, shape index: {0}]
  %s7 = inlined_call_operand.hbm [shape: f32[1,1,8], index: 7, kind: output, shape index: {1}]
  %s8 = inlined_call_operand.hbm [shape: f32[1,1,1], index: 8, kind: output, shape index: {2}]
  %9 = xla_tuple %s6, %s7, %s8
  %s10 = sld [smem:[#allocation0]]
  $region50: #{branch_0_fun.1} parent=0
    _
  %s12 = ssub.s32 1, %s10
  %s13 = scalar_select 0, %s12, %s10
  $region1: #{branch_0_fun.1} parent=0
    #allocation2 [shape = 'u8[512]{0}', space=vmem, size = 0x400, scoped, tag = 'output window, operand 1, single buffered']
    #allocation3 [shape = 's32[1]{0}', space=sflag, size = 0x4, scoped, tag = 'scoped memory for branch_0_fun.1']
    #allocation4 [shape = 'u8[512]{0}', space=vmem, size = 0x400, scoped, tag = 'output window, operand 2, single buffered']
    #allocation5 [shape = 's32[1]{0}', space=sflag, size = 0x4, scoped, tag = 'scoped memory for branch_0_fun.1']
    %14 = vsyncpa [#allocation3], 0
    %15 = vsyncpa [#allocation5], 0
    // Predicated region
    $region2: #{branch_0_fun.1} parent=1 // pred_check
      _
    $region3: #{branch_0_fun.1} parent=1 // pred_check_branch
      %17 = sbr.rel (0) target = $region5
    $region4: #{branch_0_fun.1} parent=1 // pred_region
      _
    $region5: #{branch_0_fun.1} parent=1 // pred_fallthru
      _
    // Predicated region
    $region6: #{branch_0_fun.1} parent=1 // pred_check
      _
    $region7: #{branch_0_fun.1} parent=1 // pred_check_branch
      %19 = sbr.rel (0) target = $region9
    $region8: #{branch_0_fun.1} parent=1 // pred_region
      _
    $region9: #{branch_0_fun.1} parent=1 // pred_fallthru
      _
    // Predicated region
    $region10: #{branch_0_fun.1} parent=1 // pred_check
      _
    $region11: #{branch_0_fun.1} parent=1 // pred_check_branch
      %21 = sbr.rel (0) target = $region13
    $region12: #{branch_0_fun.1} parent=1 // pred_region
      _
    $region13: #{branch_0_fun.1} parent=1 // pred_fallthru
      _
    // Predicated region
    $region14: #{branch_0_fun.1} parent=1 // pred_check
      _
    $region15: #{branch_0_fun.1} parent=1 // pred_check_branch
      %23 = sbr.rel (0) target = $region17
    $region16: #{branch_0_fun.1} parent=1 // pred_region
      _
    $region17: #{branch_0_fun.1} parent=1 // pred_fallthru
      _
    // Predicated region
    $region18: #{branch_0_fun.1} parent=1 // pred_check
      _
    $region19: #{branch_0_fun.1} parent=1 // pred_check_branch
      %25 = sbr.rel (0) target = $region21
    $region20: #{branch_0_fun.1} parent=1 // pred_region
      _
    $region21: #{branch_0_fun.1} parent=1 // pred_fallthru
      _
    // Predicated region
    $region22: #{branch_0_fun.1} parent=1 // pred_check
      _
    $region23: #{branch_0_fun.1} parent=1 // pred_check_branch
      %27 = sbr.rel (0) target = $region25
    $region24: #{branch_0_fun.1} parent=1 // pred_region
      _
    $region25: #{branch_0_fun.1} parent=1 // pred_fallthru
      _
    %v28 = vld [vmem:[%s0] sm:$0xff]
    %v29 = vld [vmem:[%s1] sm:$0x3]
    %v30 = vld [vmem:[%s2] sm:$0xff]
    %v31 = vld [vmem:[%s3] sm:$0xff]
    %v32 = vld [vmem:[%s4] sm:$0x1]
    %v33 = vld [vmem:[%s5] sm:$0x3]
    %35 = vset.pattern.permute.xlu0 0
    %36 = vperm.xlu0 %35, %v28
    %v37 = vpop.permute.xlu0 %36
    %v39 = vsub.f32 %v37, %v30
    %v40 = vmul.f32 %v39, %v39
    %42 = vset.pattern.permute.xlu0 0
    %43 = vperm.xlu0 %42, %v31
    %v44 = vpop.permute.xlu0 %43
    %v46 = vmul.f32 %v40, %v44
    %vm47 = vcmask 64512
    %v48 = vsel %vm47, %v46, 0.0
    %v49 = vrot.slane %v48, 4
    %v50 = vadd.f32 %v48, %v49
    %v51 = vrot.slane %v50, 2
    %v52 = vadd.f32 %v50, %v51
    %v53 = vrot.slane %v52, 1
    %v54 = vadd.f32 %v52, %v53
    %v55 = vrsqrt.pop %v54
    %v56 = vmul.f32 %v54, %v55
    %vm57 = vcmp.eq.f32.partialorder %v54, inf
    %v58 = vsel %vm57, %v54, %v56
    %vm59 = vcmp.eq.f32.partialorder %v54, 0.0
    %v60 = vand.u32 %v54, 2147483648
    %v61 = vsel %vm59, %v60, %v58
    %v62 = vmul.f32 %v61, -1.0
    %v63 = vmul.f32 %v62, 1.442695
    %v64 = vpow.pop %v63
    %v65 = vmul.f32 %v64, %v32
    %vm66 = vcmp.gt.f32.partialorder %v65, 0.0
    %v67 = vsel %vm66, %v65, 1.0
    %v68 = vrsqrt.pop %v67
    %v69 = vmul.f32 %v67, %v68
    %vm70 = vcmp.eq.f32.partialorder %v67, inf
    %v71 = vsel %vm70, %v67, %v69
    %vm72 = vcmp.eq.f32.partialorder %v67, 0.0
    %v73 = vand.u32 %v67, 2147483648
    %v74 = vsel %vm72, %v73, %v71
    %v75 = vmul.f32 %v74, %v67
    %v76 = vmul.f32 %v75, %v67
    %v77 = vsel %vm66, %v76, 0.0
    %vm78 = vcmask 57344
    %v79 = vsel %vm78, %v77, 0.0
    %80 = vadd.xlane.f32.xlu0 %v79
    %v81 = vpop.xlane.xlu0 %80
    %v82 = vmax.f32 %v81, 1e-30
    %v83 = vrcp.pop %v82
    %v84 = vmul.f32 %v77, %v83
    %v85 = vmul.f32 %v84, %v65
    %v86 = vmul.f32 %v85, 10.0
    %v87 = vsel %vm66, %v86, -1e+30
    %v88 = vsel %vm78, %v87, -inf
    %89 = vmax.xlane.f32.xlu0 %v88
    %v90 = vpop.xlane.xlu0 %89
    %v91 = vmax.f32 %v90, 0.0
    %v92 = vsub.f32 %v86, %v91
    %v93 = vmul.f32 %v92, 1.442695
    %v94 = vpow.pop %v93
    %v95 = vsel %vm66, %v94, 0.0
    %v96 = vsel %vm78, %v95, 0.0
    %97 = vadd.xlane.f32.xlu0 %v96
    %v98 = vpop.xlane.xlu0 %97
    %v99 = vmax.f32 %v98, 1e-30
    %v100 = vrcp.pop %v99
    %v101 = vmul.f32 %v95, %v100
    %v102 = vmul.f32 %v101, %v85
    %v103 = vmul.f32 %v102, %v33
    %v104 = vsel %vm78, %v103, 0.0
    %105 = vadd.xlane.f32.xlu0 %v104
    %v106 = vpop.xlane.xlu0 %105
    %v108 = vrot.slane %v33, 1
    %v110 = vmul.f32 %v102, %v108
    %v111 = vsel %vm78, %v110, 0.0
    %112 = vadd.xlane.f32.xlu0 %v111
    %v113 = vpop.xlane.xlu0 %112
    %v114 = vlaneseq
    %v115 = vand.u32 %v114, 127
    %vm116 = vcmp.eq.s32.totalorder %v115, 0
    %v117 = vsel %vm116, %v106, %v113
    %v118 = vmul.f32 %v117, 1.5
    %v119 = vand.u32 2147483647, %v33
    %vm120 = vcmask 58368
    %v121 = vsel %vm120, %v119, 0.0
    %v122 = vrot.slane %v121, 4
    %v123 = vadd.f32 %v121, %v122
    %v124 = vrot.slane %v123, 2
    %v125 = vadd.f32 %v123, %v124
    %v126 = vrot.slane %v125, 1
    %v127 = vadd.f32 %v125, %v126
    %129 = vset.pattern.permute.xlu0 0
    %130 = vperm.xlu0 %129, %v29
    %v131 = vpop.permute.xlu0 %130
    %v133 = vmul.f32 %v131, %v33
    %v134 = vsel %vm120, %v133, 0.0
    %v135 = vrot.slane %v134, 4
    %v136 = vadd.f32 %v134, %v135
    %v137 = vrot.slane %v136, 2
    %v138 = vadd.f32 %v136, %v137
    %v139 = vrot.slane %v138, 1
    %v140 = vadd.f32 %v138, %v139
    %vm141 = vcmp.gt.f32.partialorder %v127, 0.0
    %v142 = vmax.f32 %v127, 1e-30
    %v143 = vrcp.pop %v142
    %v144 = vmul.f32 %v140, %v143
    %v145 = vsel %vm141, %v144, 0.0
    %v146 = vmul.f32 %v145, %v102
    %v147 = vsel %vm66, %v146, 0.0
    %v148 = vsel %vm78, %v147, 0.0
    %149 = vadd.xlane.f32.xlu0 %v148
    %v150 = vpop.xlane.xlu0 %149
    %v151 = vsel %vm78, %v102, 0.0
    %152 = vadd.xlane.f32.xlu0 %v151
    %v153 = vpop.xlane.xlu0 %152
    %v154 = vmax.f32 %v153, 1e-30
    %v155 = vrcp.pop %v154
    %v156 = vmul.f32 %v150, %v155
    %vm157 = vcmask 8192
    %158 = vst.msk [vmem:[%s6] sm:$0x1] %vm157, %v118
    %159 = vst.msk [vmem:[#allocation2] sm:$0x1] %vm78, %v102
    %vm160 = vcmask 0
    %161 = vst.msk [vmem:[#allocation4] sm:$0x1] %vm160, %v156
    // Predicated region
    $region26: #{branch_0_fun.1} parent=1 // pred_check
      _
    $region27: #{branch_0_fun.1} parent=1 // pred_check_branch
      %163 = sbr.rel (0) target = $region29
    $region28: #{branch_0_fun.1} parent=1 // pred_region
      _
    $region29: #{branch_0_fun.1} parent=1 // pred_fallthru
      _
    // Predicated region
    $region30: #{branch_0_fun.1} parent=1 // pred_check
      _
    $region31: #{branch_0_fun.1} parent=1 // pred_check_branch
      %165 = sbr.rel (0) target = $region33
    $region32: #{branch_0_fun.1} parent=1 // pred_region
      %s167 = ssub.s32 16, 16
      %168 = vsyncadd [#allocation3], %s167
      %s170 = sshll.u32 [#allocation2], 4
      %s171 = int_to_ptr.vmem [resolvable:$true] %s170
      %173 = dma.vmem_to_hbm [thread:$0]  %s171, 16, %s7, [#allocation3]
    $region33: #{branch_0_fun.1} parent=1 // pred_fallthru
      _
    // Predicated region
    $region34: #{branch_0_fun.1} parent=1 // pred_check
      _
    $region35: #{branch_0_fun.1} parent=1 // pred_check_branch
      %175 = sbr.rel (0) target = $region37
    $region36: #{branch_0_fun.1} parent=1 // pred_region
      %s177 = ssub.s32 16, 16
      %178 = vsyncadd [#allocation5], %s177
      %s180 = sshll.u32 [#allocation4], 4
      %s181 = int_to_ptr.vmem [resolvable:$true] %s180
      %183 = dma.vmem_to_hbm [thread:$0]  %s181, 16, %s8, [#allocation5]
    $region37: #{branch_0_fun.1} parent=1 // pred_fallthru
      _
    // Predicated region
    $region38: #{branch_0_fun.1} parent=1 // pred_check
      _
    $region39: #{branch_0_fun.1} parent=1 // pred_check_branch
      %185 = sbr.rel (0) target = $region41
    $region40: #{branch_0_fun.1} parent=1 // pred_region
      _
    $region41: #{branch_0_fun.1} parent=1 // pred_fallthru
      _
    // Predicated region
    $region42: #{branch_0_fun.1} parent=1 // pred_check
      _
    $region43: #{branch_0_fun.1} parent=1 // pred_check_branch
      %187 = sbr.rel (0) target = $region45
    $region44: #{branch_0_fun.1} parent=1 // pred_region
      %188 = dma.done [#allocation3], 16
    $region45: #{branch_0_fun.1} parent=1 // pred_fallthru
      _
    // Predicated region
    $region46: #{branch_0_fun.1} parent=1 // pred_check
      _
    $region47: #{branch_0_fun.1} parent=1 // pred_check_branch
      %190 = sbr.rel (0) target = $region49
    $region48: #{branch_0_fun.1} parent=1 // pred_region
      %191 = dma.done [#allocation5], 16
    $region49: #{branch_0_fun.1} parent=1 // pred_fallthru
      _
    %192 = vsyncpa [#allocation3], 1
    %193 = vsyncpa [#allocation5], 1

// kernel: branch_1_fun.2
$region0: #{branch_1_fun.2}
  #allocation0 [shape = 'u32[]', space=smem, size = 0x4, offset = 0x4, fixed_abs, tag = 'smem constant byte address 0x4 - core index']
  #allocation1 [shape = 'u32[144,128]{1,0:T(1,128)}', space=vmem, size = 0x12000, scoped, tag = 'internal scratch']
  %s0 = inlined_call_operand.vmem [shape: f32[1,8,1], index: 0, kind: input, shape index: {}]
  %s1 = inlined_call_operand.vmem [shape: f32[1,2,1], index: 1, kind: input, shape index: {}]
  %s2 = inlined_call_operand.vmem [shape: f32[8,8], index: 2, kind: input, shape index: {}]
  %s3 = inlined_call_operand.vmem [shape: f32[8,1], index: 3, kind: input, shape index: {}]
  %s4 = inlined_call_operand.vmem [shape: f32[1,8], index: 4, kind: input, shape index: {}]
  %s5 = inlined_call_operand.vmem [shape: f32[2,8], index: 5, kind: input, shape index: {}]
  %s6 = inlined_call_operand.hbm [shape: f32[1,1,2], index: 6, kind: output, shape index: {0}]
  %s7 = inlined_call_operand.hbm [shape: f32[1,1,8], index: 7, kind: output, shape index: {1}]
  %s8 = inlined_call_operand.hbm [shape: f32[1,1,1], index: 8, kind: output, shape index: {2}]
  %9 = xla_tuple %s6, %s7, %s8
  %s10 = sld [smem:[#allocation0]]
  $region50: #{branch_1_fun.2} parent=0
    _
  %s12 = ssub.s32 1, %s10
  %s13 = scalar_select 0, %s12, %s10
  $region1: #{branch_1_fun.2} parent=0
    #allocation2 [shape = 'u8[512]{0}', space=vmem, size = 0x400, scoped, tag = 'output window, operand 0, single buffered']
    #allocation3 [shape = 's32[1]{0}', space=sflag, size = 0x4, scoped, tag = 'scoped memory for branch_1_fun.2']
    #allocation4 [shape = 'u8[512]{0}', space=vmem, size = 0x400, scoped, tag = 'output window, operand 1, single buffered']
    #allocation5 [shape = 's32[1]{0}', space=sflag, size = 0x4, scoped, tag = 'scoped memory for branch_1_fun.2']
    #allocation6 [shape = 'u8[512]{0}', space=vmem, size = 0x400, scoped, tag = 'output window, operand 2, single buffered']
    %14 = vsyncpa [#allocation3], 0
    %15 = vsyncpa [#allocation5], 0
    // Predicated region
    $region2: #{branch_1_fun.2} parent=1 // pred_check
      _
    $region3: #{branch_1_fun.2} parent=1 // pred_check_branch
      %17 = sbr.rel (0) target = $region5
    $region4: #{branch_1_fun.2} parent=1 // pred_region
      _
    $region5: #{branch_1_fun.2} parent=1 // pred_fallthru
      _
    // Predicated region
    $region6: #{branch_1_fun.2} parent=1 // pred_check
      _
    $region7: #{branch_1_fun.2} parent=1 // pred_check_branch
      %19 = sbr.rel (0) target = $region9
    $region8: #{branch_1_fun.2} parent=1 // pred_region
      _
    $region9: #{branch_1_fun.2} parent=1 // pred_fallthru
      _
    // Predicated region
    $region10: #{branch_1_fun.2} parent=1 // pred_check
      _
    $region11: #{branch_1_fun.2} parent=1 // pred_check_branch
      %21 = sbr.rel (0) target = $region13
    $region12: #{branch_1_fun.2} parent=1 // pred_region
      _
    $region13: #{branch_1_fun.2} parent=1 // pred_fallthru
      _
    // Predicated region
    $region14: #{branch_1_fun.2} parent=1 // pred_check
      _
    $region15: #{branch_1_fun.2} parent=1 // pred_check_branch
      %23 = sbr.rel (0) target = $region17
    $region16: #{branch_1_fun.2} parent=1 // pred_region
      _
    $region17: #{branch_1_fun.2} parent=1 // pred_fallthru
      _
    // Predicated region
    $region18: #{branch_1_fun.2} parent=1 // pred_check
      _
    $region19: #{branch_1_fun.2} parent=1 // pred_check_branch
      %25 = sbr.rel (0) target = $region21
    $region20: #{branch_1_fun.2} parent=1 // pred_region
      _
    $region21: #{branch_1_fun.2} parent=1 // pred_fallthru
      _
    // Predicated region
    $region22: #{branch_1_fun.2} parent=1 // pred_check
      _
    $region23: #{branch_1_fun.2} parent=1 // pred_check_branch
      %27 = sbr.rel (0) target = $region25
    $region24: #{branch_1_fun.2} parent=1 // pred_region
      _
    $region25: #{branch_1_fun.2} parent=1 // pred_fallthru
      _
    %v28 = vld [vmem:[%s0] sm:$0xff]
    %v29 = vld [vmem:[%s1] sm:$0x3]
    %v30 = vld [vmem:[%s2] sm:$0xff]
    %v31 = vld [vmem:[%s3] sm:$0xff]
    %v32 = vld [vmem:[%s4] sm:$0x1]
    %v33 = vld [vmem:[%s5] sm:$0x3]
    %35 = vset.pattern.permute.xlu0 0
    %36 = vperm.xlu0 %35, %v28
    %v37 = vpop.permute.xlu0 %36
    %v39 = vsub.f32 %v37, %v30
    %v40 = vmul.f32 %v39, %v39
    %42 = vset.pattern.permute.xlu0 0
    %43 = vperm.xlu0 %42, %v31
    %v44 = vpop.permute.xlu0 %43
    %v46 = vmul.f32 %v40, %v44
    %vm47 = vcmask 64512
    %v48 = vsel %vm47, %v46, 0.0
    %v49 = vrot.slane %v48, 4
    %v50 = vadd.f32 %v48, %v49
    %v51 = vrot.slane %v50, 2
    %v52 = vadd.f32 %v50, %v51
    %v53 = vrot.slane %v52, 1
    %v54 = vadd.f32 %v52, %v53
    %v55 = vrsqrt.pop %v54
    %v56 = vmul.f32 %v54, %v55
    %vm57 = vcmp.eq.f32.partialorder %v54, inf
    %v58 = vsel %vm57, %v54, %v56
    %vm59 = vcmp.eq.f32.partialorder %v54, 0.0
    %v60 = vand.u32 %v54, 2147483648
    %v61 = vsel %vm59, %v60, %v58
    %v62 = vmul.f32 %v61, -1.0
    %v63 = vmul.f32 %v62, 1.442695
    %v64 = vpow.pop %v63
    %v65 = vmul.f32 %v64, %v32
    %vm66 = vcmp.gt.f32.partialorder %v65, 0.0
    %v67 = vsel %vm66, %v65, 1.0
    %v68 = vrsqrt.pop %v67
    %v69 = vmul.f32 %v67, %v68
    %vm70 = vcmp.eq.f32.partialorder %v67, inf
    %v71 = vsel %vm70, %v67, %v69
    %vm72 = vcmp.eq.f32.partialorder %v67, 0.0
    %v73 = vand.u32 %v67, 2147483648
    %v74 = vsel %vm72, %v73, %v71
    %v75 = vmul.f32 %v74, %v67
    %v76 = vmul.f32 %v75, %v67
    %v77 = vsel %vm66, %v76, 0.0
    %vm78 = vcmask 57344
    %v79 = vsel %vm78, %v77, 0.0
    %80 = vadd.xlane.f32.xlu0 %v79
    %v81 = vpop.xlane.xlu0 %80
    %v82 = vmax.f32 %v81, 1e-30
    %v83 = vrcp.pop %v82
    %v84 = vmul.f32 %v77, %v83
    %v85 = vmul.f32 %v84, %v65
    %v86 = vmul.f32 %v85, 10.0
    %v87 = vsel %vm66, %v86, -1e+30
    %v88 = vsel %vm78, %v87, -inf
    %89 = vmax.xlane.f32.xlu0 %v88
    %v90 = vpop.xlane.xlu0 %89
    %v91 = vmax.f32 %v90, 0.0
    %v92 = vsub.f32 %v86, %v91
    %v93 = vmul.f32 %v92, 1.442695
    %v94 = vpow.pop %v93
    %v95 = vsel %vm66, %v94, 0.0
    %v96 = vsel %vm78, %v95, 0.0
    %97 = vadd.xlane.f32.xlu0 %v96
    %v98 = vpop.xlane.xlu0 %97
    %v99 = vmax.f32 %v98, 1e-30
    %v100 = vrcp.pop %v99
    %v101 = vmul.f32 %v95, %v100
    %v102 = vmul.f32 %v101, %v85
    %v103 = vmul.f32 %v102, %v33
    %v104 = vsel %vm78, %v103, 0.0
    %105 = vadd.xlane.f32.xlu0 %v104
    %v106 = vpop.xlane.xlu0 %105
    %v108 = vrot.slane %v33, 1
    %v110 = vmul.f32 %v102, %v108
    %v111 = vsel %vm78, %v110, 0.0
    %112 = vadd.xlane.f32.xlu0 %v111
    %v113 = vpop.xlane.xlu0 %112
    %v114 = vlaneseq
    %v115 = vand.u32 %v114, 127
    %vm116 = vcmp.eq.s32.totalorder %v115, 0
    %v117 = vsel %vm116, %v106, %v113
    %v118 = vmul.f32 %v117, 1.5
    %v119 = vand.u32 2147483647, %v33
    %vm120 = vcmask 58368
    %v121 = vsel %vm120, %v119, 0.0
    %v122 = vrot.slane %v121, 4
    %v123 = vadd.f32 %v121, %v122
    %v124 = vrot.slane %v123, 2
    %v125 = vadd.f32 %v123, %v124
    %v126 = vrot.slane %v125, 1
    %v127 = vadd.f32 %v125, %v126
    %129 = vset.pattern.permute.xlu0 0
    %130 = vperm.xlu0 %129, %v29
    %v131 = vpop.permute.xlu0 %130
    %v133 = vmul.f32 %v131, %v33
    %v134 = vsel %vm120, %v133, 0.0
    %v135 = vrot.slane %v134, 4
    %v136 = vadd.f32 %v134, %v135
    %v137 = vrot.slane %v136, 2
    %v138 = vadd.f32 %v136, %v137
    %v139 = vrot.slane %v138, 1
    %v140 = vadd.f32 %v138, %v139
    %vm141 = vcmp.gt.f32.partialorder %v127, 0.0
    %v142 = vmax.f32 %v127, 1e-30
    %v143 = vrcp.pop %v142
    %v144 = vmul.f32 %v140, %v143
    %v145 = vsel %vm141, %v144, 0.0
    %v146 = vmul.f32 %v145, %v102
    %v147 = vsel %vm66, %v146, 0.0
    %v148 = vsel %vm78, %v147, 0.0
    %149 = vadd.xlane.f32.xlu0 %v148
    %v150 = vpop.xlane.xlu0 %149
    %v151 = vsel %vm78, %v102, 0.0
    %152 = vadd.xlane.f32.xlu0 %v151
    %v153 = vpop.xlane.xlu0 %152
    %v154 = vmax.f32 %v153, 1e-30
    %v155 = vrcp.pop %v154
    %v156 = vmul.f32 %v150, %v155
    %vm157 = vcmask 8192
    %158 = vst.msk [vmem:[#allocation2] sm:$0x1] %vm157, %v118
    %159 = vst.msk [vmem:[#allocation4] sm:$0x1] %vm78, %v102
    %vm160 = vcmask 0
    %161 = vst.msk [vmem:[#allocation6] sm:$0x1] %vm160, %v156
    // Predicated region
    $region26: #{branch_1_fun.2} parent=1 // pred_check
      _
    $region27: #{branch_1_fun.2} parent=1 // pred_check_branch
      %163 = sbr.rel (0) target = $region29
    $region28: #{branch_1_fun.2} parent=1 // pred_region
      %s165 = ssub.s32 16, 16
      %166 = vsyncadd [#allocation3], %s165
      %s168 = sshll.u32 [#allocation2], 4
      %s169 = int_to_ptr.vmem [resolvable:$true] %s168
      %171 = dma.vmem_to_hbm [thread:$0]  %s169, 16, %s6, [#allocation3]
    $region29: #{branch_1_fun.2} parent=1 // pred_fallthru
      _
    // Predicated region
    $region30: #{branch_1_fun.2} parent=1 // pred_check
      _
    $region31: #{branch_1_fun.2} parent=1 // pred_check_branch
      %173 = sbr.rel (0) target = $region33
    $region32: #{branch_1_fun.2} parent=1 // pred_region
      %s175 = ssub.s32 16, 16
      %176 = vsyncadd [#allocation5], %s175
      %s178 = sshll.u32 [#allocation4], 4
      %s179 = int_to_ptr.vmem [resolvable:$true] %s178
      %181 = dma.vmem_to_hbm [thread:$0]  %s179, 16, %s7, [#allocation5]
    $region33: #{branch_1_fun.2} parent=1 // pred_fallthru
      _
    // Predicated region
    $region34: #{branch_1_fun.2} parent=1 // pred_check
      _
    $region35: #{branch_1_fun.2} parent=1 // pred_check_branch
      %183 = sbr.rel (0) target = $region37
    $region36: #{branch_1_fun.2} parent=1 // pred_region
      %s185 = ssub.s32 16, 16
      %186 = vsyncadd [#allocation5], %s185
      %s188 = sshll.u32 [#allocation6], 4
      %s189 = int_to_ptr.vmem [resolvable:$true] %s188
      %191 = dma.vmem_to_hbm [thread:$0]  %s189, 16, %s8, [#allocation5]
    $region37: #{branch_1_fun.2} parent=1 // pred_fallthru
      _
    // Predicated region
    $region38: #{branch_1_fun.2} parent=1 // pred_check
      _
    $region39: #{branch_1_fun.2} parent=1 // pred_check_branch
      %193 = sbr.rel (0) target = $region41
    $region40: #{branch_1_fun.2} parent=1 // pred_region
      %194 = dma.done [#allocation3], 16
    $region41: #{branch_1_fun.2} parent=1 // pred_fallthru
      _
    // Predicated region
    $region42: #{branch_1_fun.2} parent=1 // pred_check
      _
    $region43: #{branch_1_fun.2} parent=1 // pred_check_branch
      %196 = sbr.rel (0) target = $region45
    $region44: #{branch_1_fun.2} parent=1 // pred_region
      %197 = dma.done [#allocation5], 16
    $region45: #{branch_1_fun.2} parent=1 // pred_fallthru
      _
    // Predicated region
    $region46: #{branch_1_fun.2} parent=1 // pred_check
      _
    $region47: #{branch_1_fun.2} parent=1 // pred_check_branch
      %199 = sbr.rel (0) target = $region49
    $region48: #{branch_1_fun.2} parent=1 // pred_region
      %200 = dma.done [#allocation5], 16
    $region49: #{branch_1_fun.2} parent=1 // pred_fallthru
      _
    %201 = vsyncpa [#allocation3], 1
    %202 = vsyncpa [#allocation5], 1

</llo_original>
